<compile_context>
chip_gen: v7x
topology: tpu7x:2x2x1
jax: 0.10.0
libtpu: 0.0.40
codegen_flags: <defaults>
</compile_context>

<pallas_src>
import math
import numpy as np
import jax
import jax.numpy as jnp
from jax.experimental import pallas as pl
from jax.experimental.pallas import tpu as pltpu


def _r8(n):
    return -(-n // 8) * 8


# ---------------------------------------------------------------------------
# Kernels
# ---------------------------------------------------------------------------

def _build_state_kernel(nc, Cs, D, K):
    """out[c1, c2, col] = pos3[c1, col] + state_mlp(x[:, d(col)])[c2].

    const_ref : (nc + D, NCOL)   rows [0, nc): pos3 slab ; rows [nc, nc+D): one-hot E
    w_ref     : ((K+2+NH)*BH, D) pre-oriented weight blocks (see _prepare)
    xT_ref    : (K, D)           state_info[0].T
    o_ref     : (nc, Cs, NCOL)
    """
    NH = nc
    BH = _r8(nc)
    E0 = nc
    W1_0 = 0
    B1_0 = K * BH
    W2_0 = (K + 1) * BH
    B2_0 = (K + 1 + NH) * BH

    def kernel(const_ref, w_ref, xT_ref, o_ref):
        # ---- layer 1 (VPU MACs): hT[m,d] = b1[m] + sum_k w1[m,k] * x[d,k] -----------
        # w1 columns / b1 arrive pre-broadcast along D (built at init), so no XLU
        # lane-broadcasts remain on the weight operands.
        hT = w_ref[B1_0:B1_0 + NH, :]                                    # (NH, D)
        for k in range(K):                                               # static unroll, K ~ 6
            hT = hT + w_ref[W1_0 + k * BH:W1_0 + k * BH + NH, :] * xT_ref[k:k + 1, :]
        hT = hT * jax.nn.sigmoid(hT)                                     # SiLU (EUP)

        # ---- layer 2 (VPU MACs): stT[c,d] = b2[c] + sum_m w2[c,m] * hT[m,d] ---------
        stT = w_ref[B2_0:B2_0 + Cs, :]                                   # (Cs, D)
        for m in range(NH):                                              # static unroll, NH ~ 8
            stT = stT + w_ref[W2_0 + m * BH:W2_0 + m * BH + Cs, :] * hT[m:m + 1, :]

        # ---- expand stT along the flattened (d,h,w) lane axis via one-hot MACs ------
        # st_rows[c2, col] = stT[c2, col // (H*W)]
        st_rows = stT[:, 0:1] * const_ref[E0:E0 + 1, :]
        for d in range(1, D):                                            # static unroll, D ~ 4
            st_rows = st_rows + stT[:, d:d + 1] * const_ref[E0 + d:E0 + d + 1, :]

        # ---- combine with cached position slab; lane-dense full-vreg stores ---------
        o_ref[...] = const_ref[0:nc, :][:, None, :] + st_rows[None, :, :]

    return kernel


def _build_pos_kernel(nc, Cs, NCOL):
    """state_info is None: out[c1, c2, col] = pos3[c1, col] (state embedding == 0)."""
    def kernel(const_ref, o_ref):
        o_ref[...] = jnp.broadcast_to(const_ref[0:nc, :][:, None, :], (nc, Cs, NCOL))
    return kernel


# ---------------------------------------------------------------------------
# Module wrapper with init-time constant caching
# ---------------------------------------------------------------------------

def make_pe(max_positions, num_channels):
    position = jnp.arange(max_positions, dtype=jnp.float32)[:, None]
    div_term = jnp.exp(jnp.arange(0, num_channels, 2, dtype=jnp.float32)
                       * (-math.log(10000.0) / num_channels))
    ang = position * div_term
    pe = jnp.zeros((max_positions, num_channels), jnp.float32)
    pe = pe.at[:, 0::2].set(jnp.sin(ang))
    pe = pe.at[:, 1::2].set(jnp.cos(ang))
    return pe


class PositionalEmbeddingPallas:
    """Pallas port of PositionalEmbedding (exact semantics of the torch forward)."""

    def __init__(self, num_channels, max_positions=10000, state_dim=6, *, params):
        self.num_channels = num_channels
        self.max_positions = max_positions
        self.state_dim = state_dim
        w1, b1, w2, b2 = params
        self.w1 = jnp.asarray(w1, jnp.float32)     # (nc, state_dim), torch Linear layout
        self.b1 = jnp.asarray(b1, jnp.float32)     # (nc,)
        self.w2 = jnp.asarray(w2, jnp.float32)     # (nc, nc)
        self.b2 = jnp.asarray(b2, jnp.float32)     # (nc,)
        self.pe = make_pe(max_positions, num_channels)
        self._cache = {}                           # (D,H,W,Cs,has_state) -> (fwd, operands)

    # -- init-time: pos3[c1, d*H*W + h*W + w] = pe[d,h] + pe[h,w] + pe[w,c1] ----------
    def _pos_slab(self, D, H, W):
        nc, pe = self.num_channels, self.pe
        pos_dhw = pe[:D, :H][:, :, None] + pe[:H, :W][None, :, :]          # (D, H, W)
        pos4 = pe[:W, :nc].T[:, None, None, :] + pos_dhw[None]             # (nc, D, H, W)
        return pos4.reshape(nc, D * H * W).astype(jnp.float32)

    def _prepare(self, D, H, W, Cs, has_state):
        key = (D, H, W, Cs, has_state)
        if key in self._cache:
            return self._cache[key]

        nc, K = self.num_channels, self.state_dim
        NCOL = D * H * W
        vmem = pl.BlockSpec(memory_space=pltpu.MemorySpace.VMEM)
        pos3 = self._pos_slab(D, H, W)

        if has_state:
            NH, BH = nc, _r8(nc)
            # constant slab: pos3 rows + one-hot selector rows E[d, col] = [col // (H*W) == d]
            E = (jnp.arange(NCOL, dtype=jnp.int32)[None, :] // (H * W)
                 == jnp.arange(D, dtype=jnp.int32)[:, None]).astype(jnp.float32)
            const_slab = jnp.concatenate([pos3, E], axis=0)                 # (nc + D, NCOL)

            # weight slab: pre-oriented, lane width D, 8-aligned (NH, D) blocks:
            #   rows [k*BH, ..)            : w1[:, k] broadcast along D
            #   rows [K*BH, ..)            : b1      broadcast along D
            #   rows [(K+1+m)*BH, ..)      : w2[:, m] broadcast along D
            #   rows [(K+1+NH)*BH, ..)     : b2      broadcast along D
            w_slab = jnp.zeros(((K + 2 + NH) * BH, D), jnp.float32)
            for k in range(K):
                w_slab = w_slab.at[k * BH:k * BH + NH, :].set(
                    jnp.broadcast_to(self.w1[:, k:k + 1], (NH, D)))
            w_slab = w_slab.at[K * BH:K * BH + NH, :].set(
                jnp.broadcast_to(self.b1[:, None], (NH, D)))
            for m in range(NH):
                r0 = (K + 1 + m) * BH
                w_slab = w_slab.at[r0:r0 + nc, :].set(
                    jnp.broadcast_to(self.w2[:, m:m + 1], (nc, D)))
            r0 = (K + 1 + NH) * BH
            w_slab = w_slab.at[r0:r0 + nc, :].set(
                jnp.broadcast_to(self.b2[:, None], (nc, D)))

            call = pl.pallas_call(
                _build_state_kernel(nc, Cs, D, K),
                out_shape=jax.ShapeDtypeStruct((nc, Cs, NCOL), jnp.float32),
                in_specs=[vmem, vmem, vmem],
                out_specs=vmem,
            )

            @jax.jit
            def fwd(cs, ws, state_info):
                # only per-call wrapper work: transpose the tiny (D, K) state vector
                xT = state_info[0].astype(jnp.float32).T                    # (K, D)
                out3 = call(cs, ws, xT)
                return out3.reshape(1, nc, Cs, D, H, W)                     # row-major, free

            entry = (fwd, (const_slab, w_slab))
        else:
            const_slab = pos3
            call = pl.pallas_call(
                _build_pos_kernel(nc, Cs, NCOL),
                out_shape=jax.ShapeDtypeStruct((nc, Cs, NCOL), jnp.float32),
                in_specs=[vmem],
                out_specs=vmem,
            )

            @jax.jit
            def fwd(cs):
                return call(cs).reshape(1, nc, Cs, D, H, W)

            entry = (fwd, (const_slab,))

        self._cache[key] = entry
        return entry

    def __call__(self, x, state_info=None):
        B, C, D, H, W = x.shape
        nc = self.num_channels
        assert H == nc and W == nc, "torch .expand in the original requires num_channels == H == W"
        assert B == 1, "torch final broadcast-add in the original requires B == 1"
        if state_info is not None:
            fwd, operands = self._prepare(D, H, W, nc, True)
            return fwd(*operands, state_info)
        fwd, operands = self._prepare(D, H, W, C, False)
        return fwd(*operands)


# ---------------------------------------------------------------------------
# Pure-JAX reference that mirrors the PyTorch forward op-for-op
# ---------------------------------------------------------------------------

def torch_reference(x, state_info, params, pe):
    B, C, D, H, W = x.shape
    nc = pe.shape[1]
    w1, b1, w2, b2 = params
    hp = jax.lax.Precision.HIGHEST
    if state_info is not None:
        h = jnp.matmul(state_info, w1.T, precision=hp) + b1
        h = h * jax.nn.sigmoid(h)
        se = jnp.matmul(h, w2.T, precision=hp) + b2            # (B, D, nc)
        se = jnp.broadcast_to(se[:, :, :, None, None], (B, D, nc, H, W))
        se = jnp.transpose(se, (0, 2, 1, 3, 4))                # (B, nc, D, H, W)
    else:
        se = jnp.zeros((B, C, D, H, W), jnp.float32)
    d_pos = jnp.broadcast_to(pe[:D][None, None, :, :, None, None], (B, 1, D, H, W, 1))
    h_pos = jnp.broadcast_to(pe[:H][None, None, None, :, :, None], (B, 1, D, H, W, 1))
    w_pos = jnp.broadcast_to(pe[:W][None, None, None, None, :, :], (B, 1, D, H, W, nc))
    pos = d_pos + h_pos + w_pos
    pos = jnp.transpose(pos, (0, 5, 1, 2, 3, 4))               # (B, nc, 1, D, H, W)
    # torch .squeeze(-1).squeeze(-1) are no-ops here (last two dims are W, H != 1)
    return pos + se                                            # (B, nc, nc_or_C, D, H, W)


# ---------------------------------------------------------------------------
if __name__ == "__main__":
    num_channels = 8
    state_dim = 6
    max_positions = 10000
    B, C, D, H, W = 1, 4, 4, num_channels, num_channels

    key = jax.random.PRNGKey(0)
    kx, ks, k1, k2, k3, k4 = jax.random.split(key, 6)
    x = jax.random.normal(kx, (B, C, D, H, W), jnp.float32)
    state_info = jax.random.normal(ks, (B, D, state_dim), jnp.float32)
    w1 = 0.3 * jax.random.normal(k1, (num_channels, state_dim), jnp.float32)
    b1 = 0.1 * jax.random.normal(k2, (num_channels,), jnp.float32)
    w2 = 0.3 * jax.random.normal(k3, (num_channels, num_channels), jnp.float32)
    b2 = 0.1 * jax.random.normal(k4, (num_channels,), jnp.float32)
    params = (w1, b1, w2, b2)

    module = PositionalEmbeddingPallas(num_channels, max_positions, state_dim, params=params)

    # Branch 1: with state_info
    out = jax.block_until_ready(module(x, state_info))
    ref = torch_reference(x, state_info, params, module.pe)
    np.testing.assert_allclose(np.asarray(out), np.asarray(ref), rtol=1e-3, atol=1e-3)

    # Second call with new state: reuses cached slabs + compiled kernel (no rebuild)
    out2 = jax.block_until_ready(module(x, state_info + 1.0))
    ref2 = torch_reference(x, state_info + 1.0, params, module.pe)
    np.testing.assert_allclose(np.asarray(out2), np.asarray(ref2), rtol=1e-3, atol=1e-3)

    # Branch 2: state_info=None
    out_none = jax.block_until_ready(module(x, None))
    ref_none = torch_reference(x, None, params, module.pe)
    np.testing.assert_allclose(np.asarray(out_none), np.asarray(ref_none), rtol=1e-3, atol=1e-3)

    print("KERNEL_OK")
</pallas_src>

<mosaic_0001>
module attributes {stable_mosaic.version = 11 : i64} {
  func.func @kernel(%arg0: memref<12x256xf32, #tpu.memory_space<vmem>>, %arg1: memref<128x4xf32, #tpu.memory_space<vmem>>, %arg2: memref<6x4xf32, #tpu.memory_space<vmem>>, %arg3: memref<8x8x256xf32, #tpu.memory_space<vmem>>) attributes {dimension_semantics = [], scalar_prefetch = 0 : i64, scratch_operands = 0 : i64, tpu.core_type = #tpu.core_type<tc>} {
    %c48 = arith.constant 48 : index
    %c0 = arith.constant 0 : index
    %0 = vector.load %arg1[%c48, %c0] : memref<128x4xf32, #tpu.memory_space<vmem>>, vector<8x4xf32>
    %c0_0 = arith.constant 0 : index
    %c0_1 = arith.constant 0 : index
    %1 = vector.load %arg1[%c0_0, %c0_1] : memref<128x4xf32, #tpu.memory_space<vmem>>, vector<8x4xf32>
    %c0_2 = arith.constant 0 : index
    %c0_3 = arith.constant 0 : index
    %2 = vector.load %arg2[%c0_2, %c0_3] : memref<6x4xf32, #tpu.memory_space<vmem>>, vector<1x4xf32>
    %3 = vector.broadcast %2 : vector<1x4xf32> to vector<8x4xf32>
    %4 = arith.mulf %1, %3 : vector<8x4xf32>
    %5 = arith.addf %0, %4 : vector<8x4xf32>
    %c8 = arith.constant 8 : index
    %c0_4 = arith.constant 0 : index
    %6 = vector.load %arg1[%c8, %c0_4] : memref<128x4xf32, #tpu.memory_space<vmem>>, vector<8x4xf32>
    %c1 = arith.constant 1 : index
    %c0_5 = arith.constant 0 : index
    %7 = vector.load %arg2[%c1, %c0_5] : memref<6x4xf32, #tpu.memory_space<vmem>>, vector<1x4xf32>
    %8 = vector.broadcast %7 : vector<1x4xf32> to vector<8x4xf32>
    %9 = arith.mulf %6, %8 : vector<8x4xf32>
    %10 = arith.addf %5, %9 : vector<8x4xf32>
    %c16 = arith.constant 16 : index
    %c0_6 = arith.constant 0 : index
    %11 = vector.load %arg1[%c16, %c0_6] : memref<128x4xf32, #tpu.memory_space<vmem>>, vector<8x4xf32>
    %c2 = arith.constant 2 : index
    %c0_7 = arith.constant 0 : index
    %12 = vector.load %arg2[%c2, %c0_7] : memref<6x4xf32, #tpu.memory_space<vmem>>, vector<1x4xf32>
    %13 = vector.broadcast %12 : vector<1x4xf32> to vector<8x4xf32>
    %14 = arith.mulf %11, %13 : vector<8x4xf32>
    %15 = arith.addf %10, %14 : vector<8x4xf32>
    %c24 = arith.constant 24 : index
    %c0_8 = arith.constant 0 : index
    %16 = vector.load %arg1[%c24, %c0_8] : memref<128x4xf32, #tpu.memory_space<vmem>>, vector<8x4xf32>
    %c3 = arith.constant 3 : index
    %c0_9 = arith.constant 0 : index
    %17 = vector.load %arg2[%c3, %c0_9] : memref<6x4xf32, #tpu.memory_space<vmem>>, vector<1x4xf32>
    %18 = vector.broadcast %17 : vector<1x4xf32> to vector<8x4xf32>
    %19 = arith.mulf %16, %18 : vector<8x4xf32>
    %20 = arith.addf %15, %19 : vector<8x4xf32>
    %c32 = arith.constant 32 : index
    %c0_10 = arith.constant 0 : index
    %21 = vector.load %arg1[%c32, %c0_10] : memref<128x4xf32, #tpu.memory_space<vmem>>, vector<8x4xf32>
    %c4 = arith.constant 4 : index
    %c0_11 = arith.constant 0 : index
    %22 = vector.load %arg2[%c4, %c0_11] : memref<6x4xf32, #tpu.memory_space<vmem>>, vector<1x4xf32>
    %23 = vector.broadcast %22 : vector<1x4xf32> to vector<8x4xf32>
    %24 = arith.mulf %21, %23 : vector<8x4xf32>
    %25 = arith.addf %20, %24 : vector<8x4xf32>
    %c40 = arith.constant 40 : index
    %c0_12 = arith.constant 0 : index
    %26 = vector.load %arg1[%c40, %c0_12] : memref<128x4xf32, #tpu.memory_space<vmem>>, vector<8x4xf32>
    %c5 = arith.constant 5 : index
    %c0_13 = arith.constant 0 : index
    %27 = vector.load %arg2[%c5, %c0_13] : memref<6x4xf32, #tpu.memory_space<vmem>>, vector<1x4xf32>
    %28 = vector.broadcast %27 : vector<1x4xf32> to vector<8x4xf32>
    %29 = arith.mulf %26, %28 : vector<8x4xf32>
    %30 = arith.addf %25, %29 : vector<8x4xf32>
    %31 = arith.negf %30 : vector<8x4xf32>
    %32 = math.exp %31 : vector<8x4xf32>
    %cst = arith.constant 1.000000e+00 : f32
    %33 = vector.broadcast %cst : f32 to vector<8x4xf32>
    %34 = arith.addf %33, %32 : vector<8x4xf32>
    %35 = arith.divf %33, %34 : vector<8x4xf32>
    %36 = arith.mulf %30, %35 : vector<8x4xf32>
    %c120 = arith.constant 120 : index
    %c0_14 = arith.constant 0 : index
    %37 = vector.load %arg1[%c120, %c0_14] : memref<128x4xf32, #tpu.memory_space<vmem>>, vector<8x4xf32>
    %c56 = arith.constant 56 : index
    %c0_15 = arith.constant 0 : index
    %38 = vector.load %arg1[%c56, %c0_15] : memref<128x4xf32, #tpu.memory_space<vmem>>, vector<8x4xf32>
    %39 = vector.extract_strided_slice %36 {offsets = [0, 0], sizes = [1, 4], strides = [1, 1]} : vector<8x4xf32> to vector<1x4xf32>
    %40 = vector.broadcast %39 : vector<1x4xf32> to vector<8x4xf32>
    %41 = arith.mulf %38, %40 : vector<8x4xf32>
    %42 = arith.addf %37, %41 : vector<8x4xf32>
    %c64 = arith.constant 64 : index
    %c0_16 = arith.constant 0 : index
    %43 = vector.load %arg1[%c64, %c0_16] : memref<128x4xf32, #tpu.memory_space<vmem>>, vector<8x4xf32>
    %44 = vector.extract_strided_slice %36 {offsets = [1, 0], sizes = [1, 4], strides = [1, 1]} : vector<8x4xf32> to vector<1x4xf32>
    %45 = vector.broadcast %44 : vector<1x4xf32> to vector<8x4xf32>
    %46 = arith.mulf %43, %45 : vector<8x4xf32>
    %47 = arith.addf %42, %46 : vector<8x4xf32>
    %c72 = arith.constant 72 : index
    %c0_17 = arith.constant 0 : index
    %48 = vector.load %arg1[%c72, %c0_17] : memref<128x4xf32, #tpu.memory_space<vmem>>, vector<8x4xf32>
    %49 = vector.extract_strided_slice %36 {offsets = [2, 0], sizes = [1, 4], strides = [1, 1]} : vector<8x4xf32> to vector<1x4xf32>
    %50 = vector.broadcast %49 : vector<1x4xf32> to vector<8x4xf32>
    %51 = arith.mulf %48, %50 : vector<8x4xf32>
    %52 = arith.addf %47, %51 : vector<8x4xf32>
    %c80 = arith.constant 80 : index
    %c0_18 = arith.constant 0 : index
    %53 = vector.load %arg1[%c80, %c0_18] : memref<128x4xf32, #tpu.memory_space<vmem>>, vector<8x4xf32>
    %54 = vector.extract_strided_slice %36 {offsets = [3, 0], sizes = [1, 4], strides = [1, 1]} : vector<8x4xf32> to vector<1x4xf32>
    %55 = vector.broadcast %54 : vector<1x4xf32> to vector<8x4xf32>
    %56 = arith.mulf %53, %55 : vector<8x4xf32>
    %57 = arith.addf %52, %56 : vector<8x4xf32>
    %c88 = arith.constant 88 : index
    %c0_19 = arith.constant 0 : index
    %58 = vector.load %arg1[%c88, %c0_19] : memref<128x4xf32, #tpu.memory_space<vmem>>, vector<8x4xf32>
    %59 = vector.extract_strided_slice %36 {offsets = [4, 0], sizes = [1, 4], strides = [1, 1]} : vector<8x4xf32> to vector<1x4xf32>
    %60 = vector.broadcast %59 : vector<1x4xf32> to vector<8x4xf32>
    %61 = arith.mulf %58, %60 : vector<8x4xf32>
    %62 = arith.addf %57, %61 : vector<8x4xf32>
    %c96 = arith.constant 96 : index
    %c0_20 = arith.constant 0 : index
    %63 = vector.load %arg1[%c96, %c0_20] : memref<128x4xf32, #tpu.memory_space<vmem>>, vector<8x4xf32>
    %64 = vector.extract_strided_slice %36 {offsets = [5, 0], sizes = [1, 4], strides = [1, 1]} : vector<8x4xf32> to vector<1x4xf32>
    %65 = vector.broadcast %64 : vector<1x4xf32> to vector<8x4xf32>
    %66 = arith.mulf %63, %65 : vector<8x4xf32>
    %67 = arith.addf %62, %66 : vector<8x4xf32>
    %c104 = arith.constant 104 : index
    %c0_21 = arith.constant 0 : index
    %68 = vector.load %arg1[%c104, %c0_21] : memref<128x4xf32, #tpu.memory_space<vmem>>, vector<8x4xf32>
    %69 = vector.extract_strided_slice %36 {offsets = [6, 0], sizes = [1, 4], strides = [1, 1]} : vector<8x4xf32> to vector<1x4xf32>
    %70 = vector.broadcast %69 : vector<1x4xf32> to vector<8x4xf32>
    %71 = arith.mulf %68, %70 : vector<8x4xf32>
    %72 = arith.addf %67, %71 : vector<8x4xf32>
    %c112 = arith.constant 112 : index
    %c0_22 = arith.constant 0 : index
    %73 = vector.load %arg1[%c112, %c0_22] : memref<128x4xf32, #tpu.memory_space<vmem>>, vector<8x4xf32>
    %74 = vector.extract_strided_slice %36 {offsets = [7, 0], sizes = [1, 4], strides = [1, 1]} : vector<8x4xf32> to vector<1x4xf32>
    %75 = vector.broadcast %74 : vector<1x4xf32> to vector<8x4xf32>
    %76 = arith.mulf %73, %75 : vector<8x4xf32>
    %77 = arith.addf %72, %76 : vector<8x4xf32>
    %78 = vector.extract_strided_slice %77 {offsets = [0, 0], sizes = [8, 1], strides = [1, 1]} : vector<8x4xf32> to vector<8x1xf32>
    %c8_23 = arith.constant 8 : index
    %c0_24 = arith.constant 0 : index
    %79 = vector.load %arg0[%c8_23, %c0_24] : memref<12x256xf32, #tpu.memory_space<vmem>>, vector<1x256xf32>
    %80 = vector.broadcast %78 : vector<8x1xf32> to vector<8x256xf32>
    %81 = vector.broadcast %79 : vector<1x256xf32> to vector<8x256xf32>
    %82 = arith.mulf %80, %81 : vector<8x256xf32>
    %83 = vector.extract_strided_slice %77 {offsets = [0, 1], sizes = [8, 1], strides = [1, 1]} : vector<8x4xf32> to vector<8x1xf32>
    %c9 = arith.constant 9 : index
    %c0_25 = arith.constant 0 : index
    %84 = vector.load %arg0[%c9, %c0_25] : memref<12x256xf32, #tpu.memory_space<vmem>>, vector<1x256xf32>
    %85 = vector.broadcast %83 : vector<8x1xf32> to vector<8x256xf32>
    %86 = vector.broadcast %84 : vector<1x256xf32> to vector<8x256xf32>
    %87 = arith.mulf %85, %86 : vector<8x256xf32>
    %88 = arith.addf %82, %87 : vector<8x256xf32>
    %89 = vector.extract_strided_slice %77 {offsets = [0, 2], sizes = [8, 1], strides = [1, 1]} : vector<8x4xf32> to vector<8x1xf32>
    %c10 = arith.constant 10 : index
    %c0_26 = arith.constant 0 : index
    %90 = vector.load %arg0[%c10, %c0_26] : memref<12x256xf32, #tpu.memory_space<vmem>>, vector<1x256xf32>
    %91 = vector.broadcast %89 : vector<8x1xf32> to vector<8x256xf32>
    %92 = vector.broadcast %90 : vector<1x256xf32> to vector<8x256xf32>
    %93 = arith.mulf %91, %92 : vector<8x256xf32>
    %94 = arith.addf %88, %93 : vector<8x256xf32>
    %95 = vector.extract_strided_slice %77 {offsets = [0, 3], sizes = [8, 1], strides = [1, 1]} : vector<8x4xf32> to vector<8x1xf32>
    %c11 = arith.constant 11 : index
    %c0_27 = arith.constant 0 : index
    %96 = vector.load %arg0[%c11, %c0_27] : memref<12x256xf32, #tpu.memory_space<vmem>>, vector<1x256xf32>
    %97 = vector.broadcast %95 : vector<8x1xf32> to vector<8x256xf32>
    %98 = vector.broadcast %96 : vector<1x256xf32> to vector<8x256xf32>
    %99 = arith.mulf %97, %98 : vector<8x256xf32>
    %100 = arith.addf %94, %99 : vector<8x256xf32>
    %c0_28 = arith.constant 0 : index
    %c0_29 = arith.constant 0 : index
    %101 = vector.load %arg0[%c0_28, %c0_29] : memref<12x256xf32, #tpu.memory_space<vmem>>, vector<8x256xf32>
    %102 = vector.shape_cast %101 : vector<8x256xf32> to vector<8x1x256xf32>
    %103 = vector.shape_cast %100 : vector<8x256xf32> to vector<1x8x256xf32>
    %104 = vector.broadcast %102 : vector<8x1x256xf32> to vector<8x8x256xf32>
    %105 = vector.broadcast %103 : vector<1x8x256xf32> to vector<8x8x256xf32>
    %106 = arith.addf %104, %105 : vector<8x8x256xf32>
    %c0_30 = arith.constant 0 : index
    %c0_31 = arith.constant 0 : index
    %c0_32 = arith.constant 0 : index
    %107 = vector.load %arg3[%c0_30, %c0_31, %c0_32] : memref<8x8x256xf32, #tpu.memory_space<vmem>>, vector<8x8x256xf32>
    tpu.vector_store %arg3[%c0_30, %c0_31, %c0_32], %106 {strides = array<i32>} : memref<8x8x256xf32, #tpu.memory_space<vmem>>, vector<8x8x256xf32>,
    return
  }
}

</mosaic_0001>

<llo_original>
// kernel: fwd.1
$region0: #{fwd.1}
  #allocation0 [shape = 'u32[]', space=smem, size = 0x4, offset = 0x4, fixed_abs, tag = 'smem constant byte address 0x4 - core index']
  #allocation1 [shape = 'u32[144,128]{1,0:T(1,128)}', space=vmem, size = 0x12000, scoped, tag = 'internal scratch']
  %s0 = inlined_call_operand.vmem [shape: f32[12,256], index: 0, kind: input, shape index: {}]
  %s1 = inlined_call_operand.vmem [shape: f32[128,4], index: 1, kind: input, shape index: {}]
  %s2 = inlined_call_operand.vmem [shape: f32[6,4], index: 2, kind: input, shape index: {}]
  %s3 = inlined_call_operand.vmem [shape: f32[8,8,256], index: 3, kind: output, shape index: {}]
  %s4 = sld [smem:[#allocation0]]
  $region22: #{fwd.1} parent=0
    _
  %s6 = ssub.s32 1, %s4
  %s7 = scalar_select 0, %s6, %s4
  // Predicated region
  $region2: #{fwd.1} parent=0 // pred_check
    _
  $region3: #{fwd.1} parent=0 // pred_check_branch
    %9 = sbr.rel (0) target = $region5
  $region4: #{fwd.1} parent=0 // pred_region
    _
  $region5: #{fwd.1} parent=0 // pred_fallthru
    _
  // Predicated region
  $region6: #{fwd.1} parent=0 // pred_check
    _
  $region7: #{fwd.1} parent=0 // pred_check_branch
    %11 = sbr.rel (0) target = $region9
  $region8: #{fwd.1} parent=0 // pred_region
    _
  $region9: #{fwd.1} parent=0 // pred_fallthru
    _
  // Predicated region
  $region10: #{fwd.1} parent=0 // pred_check
    _
  $region11: #{fwd.1} parent=0 // pred_check_branch
    %13 = sbr.rel (0) target = $region13
  $region12: #{fwd.1} parent=0 // pred_region
    _
  $region13: #{fwd.1} parent=0 // pred_fallthru
    _
  %v14 = vld [vmem:[%s1 + $0x30] sm:$0xff]
  %v15 = vld [vmem:[%s1] sm:$0xff]
  %v16 = vld [vmem:[%s2] sm:$0x1]
  %v17 = vlaneseq
  %v18 = vshrl.u32 %v17, 7
  %v19 = vsub.s32 0, %v18
  %v20 = vrot.slane %v16, %v19
  %v21 = vmul.f32 %v15, %v20
  %v22 = vadd.f32 %v14, %v21
  %v23 = vld [vmem:[%s1 + $0x8] sm:$0xff]
  %v24 = vld [vmem:[%s2 + $0x1] sm:$0x1]
  %v25 = vlaneseq
  %v26 = vshrl.u32 %v25, 7
  %v27 = vsub.s32 0, %v26
  %v28 = vrot.slane %v24, %v27
  %v29 = vmul.f32 %v23, %v28
  %v30 = vadd.f32 %v22, %v29
  %v31 = vld [vmem:[%s1 + $0x10] sm:$0xff]
  %v32 = vld [vmem:[%s2 + $0x2] sm:$0x1]
  %v33 = vlaneseq
  %v34 = vshrl.u32 %v33, 7
  %v35 = vsub.s32 0, %v34
  %v36 = vrot.slane %v32, %v35
  %v37 = vmul.f32 %v31, %v36
  %v38 = vadd.f32 %v30, %v37
  %v39 = vld [vmem:[%s1 + $0x18] sm:$0xff]
  %v40 = vld [vmem:[%s2 + $0x3] sm:$0x1]
  %v41 = vlaneseq
  %v42 = vshrl.u32 %v41, 7
  %v43 = vsub.s32 0, %v42
  %v44 = vrot.slane %v40, %v43
  %v45 = vmul.f32 %v39, %v44
  %v46 = vadd.f32 %v38, %v45
  %v47 = vld [vmem:[%s1 + $0x20] sm:$0xff]
  %v48 = vld [vmem:[%s2 + $0x4] sm:$0x1]
  %v49 = vlaneseq
  %v50 = vshrl.u32 %v49, 7
  %v51 = vsub.s32 0, %v50
  %v52 = vrot.slane %v48, %v51
  %v53 = vmul.f32 %v47, %v52
  %v54 = vadd.f32 %v46, %v53
  %v55 = vld [vmem:[%s1 + $0x28] sm:$0xff]
  %v56 = vld [vmem:[%s2 + $0x5] sm:$0x1]
  %v57 = vlaneseq
  %v58 = vshrl.u32 %v57, 7
  %v59 = vsub.s32 0, %v58
  %v60 = vrot.slane %v56, %v59
  %v61 = vmul.f32 %v55, %v60
  %v62 = vadd.f32 %v54, %v61
  %v63 = vxor.u32 %v62, 2147483648
  %v64 = vmul.f32 %v63, 1.442695
  %v65 = vpow.pop %v64
  %v66 = vadd.f32 %v65, 1.0
  %v67 = vrcp.pop %v66
  %v68 = vmul.f32 1.0, %v67
  %v69 = vmul.f32 %v62, %v68
  %v70 = vld [vmem:[%s1 + $0x78] sm:$0xff]
  %v71 = vld [vmem:[%s1 + $0x38] sm:$0xff]
  %v72 = vlaneseq
  %v73 = vshrl.u32 %v72, 7
  %v74 = vsub.s32 0, %v73
  %v75 = vrot.slane %v69, %v74
  %v76 = vmul.f32 %v71, %v75
  %v77 = vadd.f32 %v70, %v76
  %v78 = vld [vmem:[%s1 + $0x40] sm:$0xff]
  %v79 = vlaneseq
  %v80 = vshrl.u32 %v79, 7
  %v81 = vsub.s32 1, %v80
  %v82 = vrot.slane %v69, %v81
  %v83 = vmul.f32 %v78, %v82
  %v84 = vadd.f32 %v77, %v83
  %v85 = vld [vmem:[%s1 + $0x48] sm:$0xff]
  %v86 = vlaneseq
  %v87 = vshrl.u32 %v86, 7
  %v88 = vsub.s32 2, %v87
  %v89 = vrot.slane %v69, %v88
  %v90 = vmul.f32 %v85, %v89
  %v91 = vadd.f32 %v84, %v90
  %v92 = vld [vmem:[%s1 + $0x50] sm:$0xff]
  %v93 = vlaneseq
  %v94 = vshrl.u32 %v93, 7
  %v95 = vsub.s32 3, %v94
  %v96 = vrot.slane %v69, %v95
  %v97 = vmul.f32 %v92, %v96
  %v98 = vadd.f32 %v91, %v97
  %v99 = vld [vmem:[%s1 + $0x58] sm:$0xff]
  %v100 = vlaneseq
  %v101 = vshrl.u32 %v100, 7
  %v102 = vsub.s32 4, %v101
  %v103 = vrot.slane %v69, %v102
  %v104 = vmul.f32 %v99, %v103
  %v105 = vadd.f32 %v98, %v104
  %v106 = vld [vmem:[%s1 + $0x60] sm:$0xff]
  %v107 = vlaneseq
  %v108 = vshrl.u32 %v107, 7
  %v109 = vsub.s32 5, %v108
  %v110 = vrot.slane %v69, %v109
  %v111 = vmul.f32 %v106, %v110
  %v112 = vadd.f32 %v105, %v111
  %v113 = vld [vmem:[%s1 + $0x68] sm:$0xff]
  %v114 = vlaneseq
  %v115 = vshrl.u32 %v114, 7
  %v116 = vsub.s32 6, %v115
  %v117 = vrot.slane %v69, %v116
  %v118 = vmul.f32 %v113, %v117
  %v119 = vadd.f32 %v112, %v118
  %v120 = vld [vmem:[%s1 + $0x70] sm:$0xff]
  %v121 = vlaneseq
  %v122 = vshrl.u32 %v121, 7
  %v123 = vsub.s32 7, %v122
  %v124 = vrot.slane %v69, %v123
  %v125 = vmul.f32 %v120, %v124
  %v126 = vadd.f32 %v119, %v125
  %s127 = scalar_lea.vmem %s0, 16
  %v128 = vld [vmem:[%s127] ss:$8 sm:$0x3]
  %130 = vset.pattern.permute.xlu0 0
  %131 = vperm.xlu0 %130, %v126
  %v132 = vpop.permute.xlu0 %131
  %v135 = vlaneseq
  %v136 = vshrl.u32 %v135, 7
  %v137 = vsub.s32 0, %v136
  %v138 = vrot.slane %v128, %v137
  %v139 = vlaneseq
  %v140 = vshrl.u32 %v139, 7
  %v141 = vsub.s32 1, %v140
  %v142 = vrot.slane %v128, %v141
  %v145 = vmul.f32 %v132, %v138
  %v146 = vmul.f32 %v132, %v142
  %s147 = scalar_lea.vmem %s0, 17
  %v148 = vld [vmem:[%s147] ss:$8 sm:$0x3]
  %149 = vset.pattern.permute.xlu0 1
  %150 = vperm.xlu0 %149, %v126
  %v151 = vpop.permute.xlu0 %150
  %v154 = vlaneseq
  %v155 = vshrl.u32 %v154, 7
  %v156 = vsub.s32 0, %v155
  %v157 = vrot.slane %v148, %v156
  %v158 = vlaneseq
  %v159 = vshrl.u32 %v158, 7
  %v160 = vsub.s32 1, %v159
  %v161 = vrot.slane %v148, %v160
  %v164 = vmul.f32 %v151, %v157
  %v165 = vmul.f32 %v151, %v161
  %v166 = vadd.f32 %v145, %v164
  %v167 = vadd.f32 %v146, %v165
  %s168 = scalar_lea.vmem %s0, 18
  %v169 = vld [vmem:[%s168] ss:$8 sm:$0x3]
  %170 = vset.pattern.permute.xlu0 2
  %171 = vperm.xlu0 %170, %v126
  %v172 = vpop.permute.xlu0 %171
  %v175 = vlaneseq
  %v176 = vshrl.u32 %v175, 7
  %v177 = vsub.s32 0, %v176
  %v178 = vrot.slane %v169, %v177
  %v179 = vlaneseq
  %v180 = vshrl.u32 %v179, 7
  %v181 = vsub.s32 1, %v180
  %v182 = vrot.slane %v169, %v181
  %v185 = vmul.f32 %v172, %v178
  %v186 = vmul.f32 %v172, %v182
  %v187 = vadd.f32 %v166, %v185
  %v188 = vadd.f32 %v167, %v186
  %s189 = scalar_lea.vmem %s0, 19
  %v190 = vld [vmem:[%s189] ss:$8 sm:$0x3]
  %191 = vset.pattern.permute.xlu0 3
  %192 = vperm.xlu0 %191, %v126
  %v193 = vpop.permute.xlu0 %192
  %v196 = vlaneseq
  %v197 = vshrl.u32 %v196, 7
  %v198 = vsub.s32 0, %v197
  %v199 = vrot.slane %v190, %v198
  %v200 = vlaneseq
  %v201 = vshrl.u32 %v200, 7
  %v202 = vsub.s32 1, %v201
  %v203 = vrot.slane %v190, %v202
  %v206 = vmul.f32 %v193, %v199
  %v207 = vmul.f32 %v193, %v203
  %v208 = vadd.f32 %v187, %v206
  %v209 = vadd.f32 %v188, %v207
  %v210 = vld [vmem:[%s0] sm:$0xff]
  %v211 = vld [vmem:[%s0 + $0x8] sm:$0xff]
  %v214 = vcombine.low %v210, %v211
  %v215 = vcombine.high %v210, %v211
  %v217 = vunpack.c.l.s4 1966171168
  %v218 = vunpack.c.0.s8 %v217
  %v219 = vlaneseq
  %v220 = vshrl.u32 %v219, 7
  %v221 = vsub.s32 %v218, %v220
  %v222 = vrot.slane %v214, %v221
  %v224 = vunpack.c.l.s4 1966171168
  %v225 = vunpack.c.0.s8 %v224
  %v226 = vlaneseq
  %v227 = vshrl.u32 %v226, 7
  %v228 = vsub.s32 %v225, %v227
  %v229 = vrot.slane %v215, %v228
  %v230 = vcombine.high %v222, %v222
  %v231 = vcombine.high %v229, %v229
  %v233 = vunpack.c.l.s4 1966171168
  %v234 = vunpack.c.0.s8 %v233
  %v235 = vlaneseq
  %v236 = vshrl.u32 %v235, 7
  %v237 = vsub.s32 %v234, %v236
  %v238 = vrot.slane %v222, %v237
  %v240 = vunpack.c.l.s4 1966171168
  %v241 = vunpack.c.0.s8 %v240
  %v242 = vlaneseq
  %v243 = vshrl.u32 %v242, 7
  %v244 = vsub.s32 %v241, %v243
  %v245 = vrot.slane %v229, %v244
  %v247 = vunpack.c.l.s4 1966171168
  %v248 = vunpack.c.0.s8 %v247
  %v249 = vlaneseq
  %v250 = vshrl.u32 %v249, 7
  %v251 = vsub.s32 %v248, %v250
  %v252 = vrot.slane %v230, %v251
  %v254 = vunpack.c.l.s4 1966171168
  %v255 = vunpack.c.0.s8 %v254
  %v256 = vlaneseq
  %v257 = vshrl.u32 %v256, 7
  %v258 = vsub.s32 %v255, %v257
  %v259 = vrot.slane %v231, %v258
  %v260 = vcombine.high %v238, %v238
  %v261 = vcombine.high %v245, %v245
  %v262 = vcombine.high %v252, %v252
  %v263 = vcombine.high %v259, %v259
  %v264 = vlaneseq
  %v265 = vshrl.u32 %v264, 7
  %v266 = vsub.s32 0, %v265
  %v267 = vrot.slane %v238, %v266
  %v268 = vlaneseq
  %v269 = vshrl.u32 %v268, 7
  %v270 = vsub.s32 1, %v269
  %v271 = vrot.slane %v238, %v270
  %v272 = vlaneseq
  %v273 = vshrl.u32 %v272, 7
  %v274 = vsub.s32 0, %v273
  %v275 = vrot.slane %v252, %v274
  %v276 = vlaneseq
  %v277 = vshrl.u32 %v276, 7
  %v278 = vsub.s32 1, %v277
  %v279 = vrot.slane %v252, %v278
  %v280 = vlaneseq
  %v281 = vshrl.u32 %v280, 7
  %v282 = vsub.s32 0, %v281
  %v283 = vrot.slane %v260, %v282
  %v284 = vlaneseq
  %v285 = vshrl.u32 %v284, 7
  %v286 = vsub.s32 1, %v285
  %v287 = vrot.slane %v260, %v286
  %v288 = vlaneseq
  %v289 = vshrl.u32 %v288, 7
  %v290 = vsub.s32 0, %v289
  %v291 = vrot.slane %v262, %v290
  %v292 = vlaneseq
  %v293 = vshrl.u32 %v292, 7
  %v294 = vsub.s32 1, %v293
  %v295 = vrot.slane %v262, %v294
  %v296 = vlaneseq
  %v297 = vshrl.u32 %v296, 7
  %v298 = vsub.s32 0, %v297
  %v299 = vrot.slane %v245, %v298
  %v300 = vlaneseq
  %v301 = vshrl.u32 %v300, 7
  %v302 = vsub.s32 1, %v301
  %v303 = vrot.slane %v245, %v302
  %v304 = vlaneseq
  %v305 = vshrl.u32 %v304, 7
  %v306 = vsub.s32 0, %v305
  %v307 = vrot.slane %v259, %v306
  %v308 = vlaneseq
  %v309 = vshrl.u32 %v308, 7
  %v310 = vsub.s32 1, %v309
  %v311 = vrot.slane %v259, %v310
  %v312 = vlaneseq
  %v313 = vshrl.u32 %v312, 7
  %v314 = vsub.s32 0, %v313
  %v315 = vrot.slane %v261, %v314
  %v316 = vlaneseq
  %v317 = vshrl.u32 %v316, 7
  %v318 = vsub.s32 1, %v317
  %v319 = vrot.slane %v261, %v318
  %v320 = vlaneseq
  %v321 = vshrl.u32 %v320, 7
  %v322 = vsub.s32 0, %v321
  %v323 = vrot.slane %v263, %v322
  %v324 = vlaneseq
  %v325 = vshrl.u32 %v324, 7
  %v326 = vsub.s32 1, %v325
  %v327 = vrot.slane %v263, %v326
  %v344 = vadd.f32 %v267, %v208
  %v345 = vadd.f32 %v271, %v209
  %v346 = vadd.f32 %v275, %v208
  %v347 = vadd.f32 %v279, %v209
  %v348 = vadd.f32 %v283, %v208
  %v349 = vadd.f32 %v287, %v209
  %v350 = vadd.f32 %v291, %v208
  %v351 = vadd.f32 %v295, %v209
  %v352 = vadd.f32 %v299, %v208
  %v353 = vadd.f32 %v303, %v209
  %v354 = vadd.f32 %v307, %v208
  %v355 = vadd.f32 %v311, %v209
  %v356 = vadd.f32 %v315, %v208
  %v357 = vadd.f32 %v319, %v209
  %v358 = vadd.f32 %v323, %v208
  %v359 = vadd.f32 %v327, %v209
  %360 = vst [vmem:[%s3] sm:$0xff] %v344
  %361 = vst [vmem:[%s3 + $0x8] sm:$0xff] %v345
  %362 = vst [vmem:[%s3 + $0x10] sm:$0xff] %v346
  %363 = vst [vmem:[%s3 + $0x18] sm:$0xff] %v347
  %364 = vst [vmem:[%s3 + $0x20] sm:$0xff] %v348
  %365 = vst [vmem:[%s3 + $0x28] sm:$0xff] %v349
  %366 = vst [vmem:[%s3 + $0x30] sm:$0xff] %v350
  %367 = vst [vmem:[%s3 + $0x38] sm:$0xff] %v351
  %368 = vst [vmem:[%s3 + $0x40] sm:$0xff] %v352
  %369 = vst [vmem:[%s3 + $0x48] sm:$0xff] %v353
  %370 = vst [vmem:[%s3 + $0x50] sm:$0xff] %v354
  %371 = vst [vmem:[%s3 + $0x58] sm:$0xff] %v355
  %372 = vst [vmem:[%s3 + $0x60] sm:$0xff] %v356
  %373 = vst [vmem:[%s3 + $0x68] sm:$0xff] %v357
  %374 = vst [vmem:[%s3 + $0x70] sm:$0xff] %v358
  %375 = vst [vmem:[%s3 + $0x78] sm:$0xff] %v359
  // Predicated region
  $region14: #{fwd.1} parent=0 // pred_check
    _
  $region15: #{fwd.1} parent=0 // pred_check_branch
    %377 = sbr.rel (0) target = $region17
  $region16: #{fwd.1} parent=0 // pred_region
    _
  $region17: #{fwd.1} parent=0 // pred_fallthru
    _
  // Predicated region
  $region18: #{fwd.1} parent=0 // pred_check
    _
  $region19: #{fwd.1} parent=0 // pred_check_branch
    %379 = sbr.rel (0) target = $region21
  $region20: #{fwd.1} parent=0 // pred_region
    _
  $region21: #{fwd.1} parent=0 // pred_fallthru
    _

</llo_original>
